<compile_context>
chip_gen: v6e
topology: v6e:2x2x1
jax: 0.10.0
libtpu: 0.0.40
codegen_flags: <defaults>
</compile_context>

<pallas_src>
import jax
import jax.numpy as jnp
import numpy as np
from jax.experimental import pallas as pl
from jax.experimental.pallas import tpu as pltpu

# ----------------------------- configuration --------------------------------
N_USERS = 8
N_ITEMS = 8
FEAT_EMBED_DIM = 32
IMG_FEAT_DIM = 64
TXT_FEAT_DIM = 48
N_LAYERS = 2
ALPHA = 0.2
HAS_NORM = True
# agg='concat', cf=False, lightgcn=False  (see MeGCN.forward)

LANE = 128                              # lane-dense compute width
D2 = 2 * FEAT_EMBED_DIM                 # 64  : [img | txt] fused modality width
F_COMB = IMG_FEAT_DIM + TXT_FEAT_DIM    # 112 : concatenated raw feature width
F_PAD = LANE                            # 128 : 112 feats + 1 bias col + 15 zero pad
N_NODES = N_USERS + N_ITEMS


# ------------------------------ fused Pallas kernel ---------------------------
def monet_fused_kernel(a_ref, prefs_ref, feats_ref, w_ref,
                       user_ref, item_ref, x_sc):
    """Entire MONET forward on a 128-lane slab, fully resident in VMEM.

    a_ref     : (N_NODES, N_NODES)  dense symmetric-normalized adjacency
    prefs_ref : (N_USERS, 128)      [image_preference | text_preference | 0...]
    feats_ref : (N_ITEMS, 128)      [image_feats | text_feats | 1 | 0...]
    w_ref     : (128, 128)          block-diag [W_img; W_txt] + bias row, 0-padded
    user_ref  : (N_USERS, 64)       output: concat'd user preference
    item_ref  : (N_ITEMS, 64)       output: concat'd item embeddings
    x_sc      : (N_NODES, 128)      VMEM scratch holding the fused GCN slab
    """
    n_users = prefs_ref.shape[0]

    # 1) both modality Linear transforms in one MXU call (bias folded in).
    y = jnp.dot(feats_ref[...], w_ref[...],
                preferred_element_type=jnp.float32)          # (N_ITEMS, 128)

    if HAS_NORM:
        # per-modality row-wise L2 normalize (F.normalize, eps=1e-12)
        col = jax.lax.broadcasted_iota(jnp.int32, y.shape, 1)
        img_mask = col < FEAT_EMBED_DIM
        txt_mask = jnp.logical_and(col >= FEAT_EMBED_DIM, col < D2)
        y2 = y * y
        ss_img = jnp.sum(jnp.where(img_mask, y2, 0.0), axis=-1, keepdims=True)
        ss_txt = jnp.sum(jnp.where(txt_mask, y2, 0.0), axis=-1, keepdims=True)
        eps_sq = 1e-24  # (1e-12)^2 : rsqrt(max(ss, eps^2)) == 1 / max(sqrt(ss), eps)
        inv_img = jax.lax.rsqrt(jnp.maximum(ss_img, eps_sq))
        inv_txt = jax.lax.rsqrt(jnp.maximum(ss_txt, eps_sq))
        # padding columns of y are exactly 0, so they stay 0 after scaling.
        y = y * jnp.where(img_mask, inv_img, inv_txt)

    # 2) stack user preferences on top of item embeddings via staged VMEM
    #    writes (both halves are 8-row sublane-aligned -> unmasked stores,
    #    no concat materialization).
    x_sc[:n_users, :] = prefs_ref[...]
    x_sc[n_users:, :] = y
    x = x_sc[...]

    # 3) n_layers of MeGCN propagation on the fused slab:
    #    X <- A_hat @ X + alpha * X   (both modalities at once, 128-wide MXU)
    a = a_ref[...]
    for _ in range(N_LAYERS):                                # small static trip count
        x = jnp.dot(a, x, preferred_element_type=jnp.float32) + ALPHA * x

    # 4) agg == 'concat', cf == False: emit the consumed outputs directly.
    user_ref[...] = x[:n_users, :D2].astype(user_ref.dtype)
    item_ref[...] = x[n_users:, :D2].astype(item_ref.dtype)


# ------------------------------- MONET forward --------------------------------
@jax.jit
def monet_forward(a_hat, prefs, feats, w):
    """Inputs are the pre-packed lane-dense slabs (built once at model init)."""
    n_nodes = a_hat.shape[0]
    n_users = prefs.shape[0]
    n_items = feats.shape[0]

    flops = 2 * (n_items * F_PAD * LANE + N_LAYERS * n_nodes * n_nodes * LANE)
    bytes_accessed = 4 * (n_nodes * n_nodes + n_users * LANE + n_items * F_PAD
                          + F_PAD * LANE + (n_users + n_items) * D2)

    user_pref, items = pl.pallas_call(
        monet_fused_kernel,
        out_shape=(jax.ShapeDtypeStruct((n_users, D2), jnp.float32),
                   jax.ShapeDtypeStruct((n_items, D2), jnp.float32)),
        in_specs=[
            pl.BlockSpec(memory_space=pltpu.MemorySpace.VMEM),   # A_hat
            pl.BlockSpec(memory_space=pltpu.MemorySpace.VMEM),   # prefs
            pl.BlockSpec(memory_space=pltpu.MemorySpace.VMEM),   # feats
            pl.BlockSpec(memory_space=pltpu.MemorySpace.VMEM),   # block-diag W
        ],
        out_specs=(
            pl.BlockSpec(memory_space=pltpu.MemorySpace.VMEM),   # user_preference
            pl.BlockSpec(memory_space=pltpu.MemorySpace.VMEM),   # items
        ),
        scratch_shapes=[pltpu.VMEM((n_nodes, LANE), jnp.float32)],
        cost_estimate=pl.CostEstimate(flops=flops,
                                      transcendentals=2 * n_items,
                                      bytes_accessed=bytes_accessed),
    )(a_hat, prefs, feats, w)
    return user_pref, items


# ------------------- one-time host-side packing (model init) ------------------
def build_normalized_adj_np(pairs, n_users, n_items):
    """Dense equivalent of normalize_laplacian + symmetric bipartite edge_index."""
    n = n_users + n_items
    a = np.zeros((n, n), np.float32)
    for u, i in pairs:
        a[u, n_users + i] = 1.0
        a[n_users + i, u] = 1.0
    deg = a.sum(axis=1)
    dinv = np.where(deg > 0, deg ** -0.5, 0.0)   # masked_fill(inf, 0)
    return a * dinv[:, None] * dinv[None, :]


def pack_monet_inputs(params, image_feats, text_feats, pairs, n_users, n_items):
    """Pack everything into lane-dense slabs ONCE (outside the jitted forward)."""
    # combined item features + ones column (bias) + zero pad -> (N_ITEMS, 128)
    feats = np.zeros((n_items, F_PAD), np.float32)
    feats[:, :IMG_FEAT_DIM] = np.asarray(image_feats)
    feats[:, IMG_FEAT_DIM:F_COMB] = np.asarray(text_feats)
    feats[:, F_COMB] = 1.0

    # block-diagonal weight [[W_img, 0], [0, W_txt]] + bias row, padded to (128, 128)
    w = np.zeros((F_PAD, LANE), np.float32)
    w[:IMG_FEAT_DIM, :FEAT_EMBED_DIM] = np.asarray(params["img_w_t"])
    w[IMG_FEAT_DIM:F_COMB, FEAT_EMBED_DIM:D2] = np.asarray(params["txt_w_t"])
    w[F_COMB, :FEAT_EMBED_DIM] = np.asarray(params["img_b"][0])
    w[F_COMB, FEAT_EMBED_DIM:D2] = np.asarray(params["txt_b"][0])

    # user preferences [img | txt] on the lane axis, padded to 128 (zero pad!)
    prefs = np.zeros((n_users, LANE), np.float32)
    prefs[:, :FEAT_EMBED_DIM] = np.asarray(params["image_preference"])
    prefs[:, FEAT_EMBED_DIM:D2] = np.asarray(params["text_preference"])

    a_hat = build_normalized_adj_np(pairs, n_users, n_items)

    return (jnp.asarray(a_hat), jnp.asarray(prefs),
            jnp.asarray(feats), jnp.asarray(w))


# --------------------------- pure-JAX reference (check) ----------------------
def monet_reference(params, image_feats, text_feats, a_hat):
    def trs(x, w_t, b):
        y = x @ w_t + b
        if HAS_NORM:
            y = y / jnp.maximum(jnp.sqrt(jnp.sum(y * y, -1, keepdims=True)), 1e-12)
        return y

    image_emb = trs(image_feats, params["img_w_t"], params["img_b"])
    text_emb = trs(text_feats, params["txt_w_t"], params["txt_b"])
    ego_i = jnp.concatenate([params["image_preference"], image_emb], 0)
    ego_t = jnp.concatenate([params["text_preference"], text_emb], 0)
    for _ in range(N_LAYERS):
        ego_i = a_hat @ ego_i + ALPHA * ego_i
        ego_t = a_hat @ ego_t + ALPHA * ego_t
    items = jnp.concatenate([ego_i[N_USERS:], ego_t[N_USERS:]], 1)
    user = jnp.concatenate([ego_i[:N_USERS], ego_t[:N_USERS]], 1)
    return user, items


# ----------------------------------- main -------------------------------------
if __name__ == "__main__":
    key = jax.random.PRNGKey(0)
    keys = jax.random.split(key, 8)

    # frozen pretrained features (image_feats / text_feats in the torch ctor)
    image_feats = jax.random.normal(keys[0], (N_ITEMS, IMG_FEAT_DIM), jnp.float32)
    text_feats = jax.random.normal(keys[1], (N_ITEMS, TXT_FEAT_DIM), jnp.float32)

    # deterministic parameter init (shapes follow MeGCN.__init__; values synthetic)
    def xavier(k, shape):
        bound = float(np.sqrt(6.0 / (shape[0] + shape[1])))
        return jax.random.uniform(k, shape, jnp.float32, -bound, bound)

    params = {
        "image_preference": xavier(keys[2], (N_USERS, FEAT_EMBED_DIM)),
        "text_preference": xavier(keys[3], (N_USERS, FEAT_EMBED_DIM)),
        # Linear weights stored pre-transposed as (in_features, out_features)
        "img_w_t": xavier(keys[4], (IMG_FEAT_DIM, FEAT_EMBED_DIM)),
        "img_b": jax.random.uniform(keys[5], (1, FEAT_EMBED_DIM), jnp.float32, -0.1, 0.1),
        "txt_w_t": xavier(keys[6], (TXT_FEAT_DIM, FEAT_EMBED_DIM)),
        "txt_b": jax.random.uniform(keys[7], (1, FEAT_EMBED_DIM), jnp.float32, -0.1, 0.1),
    }

    # deterministic, unique (user, item) interaction pairs -> nonzero_idx
    pairs = sorted({(u, (u * 3 + off) % N_ITEMS) for u in range(N_USERS) for off in (0, 1, 5)})

    # one-time packing at "model init" (no per-call HBM glue inside the forward)
    a_hat, prefs, feats, w = pack_monet_inputs(
        params, image_feats, text_feats, pairs, N_USERS, N_ITEMS)

    user_pref, items = monet_forward(a_hat, prefs, feats, w)
    jax.block_until_ready((user_pref, items))

    ref_user, ref_items = monet_reference(params, image_feats, text_feats, a_hat)
    np.testing.assert_allclose(np.asarray(user_pref), np.asarray(ref_user),
                               rtol=1e-4, atol=1e-5)
    np.testing.assert_allclose(np.asarray(items), np.asarray(ref_items),
                               rtol=1e-4, atol=1e-5)

    assert user_pref.shape == (N_USERS, 2 * FEAT_EMBED_DIM)
    assert items.shape == (N_ITEMS, 2 * FEAT_EMBED_DIM)
    print("KERNEL_OK")
</pallas_src>

<mosaic_0001>
module attributes {stable_mosaic.version = 11 : i64} {
  func.func @monet_fused_kernel(%arg0: memref<16x16xf32, #tpu.memory_space<vmem>>, %arg1: memref<8x128xf32, #tpu.memory_space<vmem>>, %arg2: memref<8x128xf32, #tpu.memory_space<vmem>>, %arg3: memref<128x128xf32, #tpu.memory_space<vmem>>, %arg4: memref<8x64xf32, #tpu.memory_space<vmem>>, %arg5: memref<8x64xf32, #tpu.memory_space<vmem>>, %arg6: memref<16x128xf32, #tpu.memory_space<vmem>>) attributes {dimension_semantics = [], scalar_prefetch = 0 : i64, scratch_operands = 1 : i64, tpu.core_type = #tpu.core_type<tc>} {
    %c0 = arith.constant 0 : index
    %c0_0 = arith.constant 0 : index
    %0 = vector.load %arg2[%c0, %c0_0] : memref<8x128xf32, #tpu.memory_space<vmem>>, vector<8x128xf32>
    %c0_1 = arith.constant 0 : index
    %c0_2 = arith.constant 0 : index
    %1 = vector.load %arg3[%c0_1, %c0_2] : memref<128x128xf32, #tpu.memory_space<vmem>>, vector<128x128xf32>
    %cst = arith.constant dense<0.000000e+00> : vector<8x128xf32>
    %2 = tpu.matmul %0, %1, %cst {dimension_numbers = #tpu.dot_dimension_numbers<[1], [0], [0], [1], [0, 0, 1, 1], [], []>} : vector<8x128xf32>, vector<128x128xf32>, vector<8x128xf32> -> vector<8x128xf32>
    %3 = tpu.iota {dimensions = array<i32: 1>} : vector<8x128xi32>
    %c32_i32 = arith.constant 32 : i32
    %4 = vector.broadcast %c32_i32 : i32 to vector<8x128xi32>
    %5 = arith.cmpi slt, %3, %4 : vector<8x128xi32>
    %c32_i32_3 = arith.constant 32 : i32
    %6 = vector.broadcast %c32_i32_3 : i32 to vector<8x128xi32>
    %7 = arith.cmpi sge, %3, %6 : vector<8x128xi32>
    %c64_i32 = arith.constant 64 : i32
    %8 = vector.broadcast %c64_i32 : i32 to vector<8x128xi32>
    %9 = arith.cmpi slt, %3, %8 : vector<8x128xi32>
    %10 = arith.andi %7, %9 : vector<8x128xi1>
    %11 = arith.mulf %2, %2 : vector<8x128xf32>
    %cst_4 = arith.constant 0.000000e+00 : f32
    %12 = vector.broadcast %cst_4 : f32 to vector<8x128xf32>
    %13 = arith.select %5, %11, %12 : vector<8x128xi1>, vector<8x128xf32>
    %cst_5 = arith.constant dense<0.000000e+00> : vector<8xf32>
    %14 = vector.multi_reduction <add>, %13, %cst_5 [1] : vector<8x128xf32> to vector<8xf32>
    %15 = vector.shape_cast %14 : vector<8xf32> to vector<8x1xf32>
    %cst_6 = arith.constant 0.000000e+00 : f32
    %16 = vector.broadcast %cst_6 : f32 to vector<8x128xf32>
    %17 = arith.select %10, %11, %16 : vector<8x128xi1>, vector<8x128xf32>
    %cst_7 = arith.constant dense<0.000000e+00> : vector<8xf32>
    %18 = vector.multi_reduction <add>, %17, %cst_7 [1] : vector<8x128xf32> to vector<8xf32>
    %19 = vector.shape_cast %18 : vector<8xf32> to vector<8x1xf32>
    %cst_8 = arith.constant 1.000000e-24 : f32
    %20 = vector.broadcast %cst_8 : f32 to vector<8x1xf32>
    %21 = arith.maximumf %15, %20 : vector<8x1xf32>
    %22 = math.rsqrt %21 : vector<8x1xf32>
    %cst_9 = arith.constant 1.000000e-24 : f32
    %23 = vector.broadcast %cst_9 : f32 to vector<8x1xf32>
    %24 = arith.maximumf %19, %23 : vector<8x1xf32>
    %25 = math.rsqrt %24 : vector<8x1xf32>
    %26 = vector.shape_cast %22 : vector<8x1xf32> to vector<8x1xf32>
    %27 = vector.broadcast %26 : vector<8x1xf32> to vector<8x128xf32>
    %28 = vector.shape_cast %25 : vector<8x1xf32> to vector<8x1xf32>
    %29 = vector.broadcast %28 : vector<8x1xf32> to vector<8x128xf32>
    %30 = arith.select %5, %27, %29 : vector<8x128xi1>, vector<8x128xf32>
    %31 = arith.mulf %2, %30 : vector<8x128xf32>
    %c0_10 = arith.constant 0 : index
    %c0_11 = arith.constant 0 : index
    %32 = vector.load %arg1[%c0_10, %c0_11] : memref<8x128xf32, #tpu.memory_space<vmem>>, vector<8x128xf32>
    %c0_12 = arith.constant 0 : index
    %c0_13 = arith.constant 0 : index
    %33 = vector.load %arg6[%c0_12, %c0_13] : memref<16x128xf32, #tpu.memory_space<vmem>>, vector<8x128xf32>
    tpu.vector_store %arg6[%c0_12, %c0_13], %32 {strides = array<i32>} : memref<16x128xf32, #tpu.memory_space<vmem>>, vector<8x128xf32>,
    %c8 = arith.constant 8 : index
    %c0_14 = arith.constant 0 : index
    %34 = vector.load %arg6[%c8, %c0_14] : memref<16x128xf32, #tpu.memory_space<vmem>>, vector<8x128xf32>
    tpu.vector_store %arg6[%c8, %c0_14], %31 {strides = array<i32>} : memref<16x128xf32, #tpu.memory_space<vmem>>, vector<8x128xf32>,
    %c0_15 = arith.constant 0 : index
    %c0_16 = arith.constant 0 : index
    %35 = vector.load %arg6[%c0_15, %c0_16] : memref<16x128xf32, #tpu.memory_space<vmem>>, vector<16x128xf32>
    %c0_17 = arith.constant 0 : index
    %c0_18 = arith.constant 0 : index
    %36 = vector.load %arg0[%c0_17, %c0_18] : memref<16x16xf32, #tpu.memory_space<vmem>>, vector<16x16xf32>
    %cst_19 = arith.constant dense<0.000000e+00> : vector<16x128xf32>
    %37 = tpu.matmul %36, %35, %cst_19 {dimension_numbers = #tpu.dot_dimension_numbers<[1], [0], [0], [1], [0, 0, 1, 1], [], []>} : vector<16x16xf32>, vector<16x128xf32>, vector<16x128xf32> -> vector<16x128xf32>
    %cst_20 = arith.constant 2.000000e-01 : f32
    %38 = vector.broadcast %cst_20 : f32 to vector<16x128xf32>
    %39 = arith.mulf %38, %35 : vector<16x128xf32>
    %40 = arith.addf %37, %39 : vector<16x128xf32>
    %cst_21 = arith.constant dense<0.000000e+00> : vector<16x128xf32>
    %41 = tpu.matmul %36, %40, %cst_21 {dimension_numbers = #tpu.dot_dimension_numbers<[1], [0], [0], [1], [0, 0, 1, 1], [], []>} : vector<16x16xf32>, vector<16x128xf32>, vector<16x128xf32> -> vector<16x128xf32>
    %cst_22 = arith.constant 2.000000e-01 : f32
    %42 = vector.broadcast %cst_22 : f32 to vector<16x128xf32>
    %43 = arith.mulf %42, %40 : vector<16x128xf32>
    %44 = arith.addf %41, %43 : vector<16x128xf32>
    %45 = vector.extract_strided_slice %44 {offsets = [0, 0], sizes = [8, 64], strides = [1, 1]} : vector<16x128xf32> to vector<8x64xf32>
    %c0_23 = arith.constant 0 : index
    %c0_24 = arith.constant 0 : index
    %46 = vector.load %arg4[%c0_23, %c0_24] : memref<8x64xf32, #tpu.memory_space<vmem>>, vector<8x64xf32>
    tpu.vector_store %arg4[%c0_23, %c0_24], %45 {strides = array<i32>} : memref<8x64xf32, #tpu.memory_space<vmem>>, vector<8x64xf32>,
    %47 = vector.extract_strided_slice %44 {offsets = [8, 0], sizes = [8, 64], strides = [1, 1]} : vector<16x128xf32> to vector<8x64xf32>
    %c0_25 = arith.constant 0 : index
    %c0_26 = arith.constant 0 : index
    %48 = vector.load %arg5[%c0_25, %c0_26] : memref<8x64xf32, #tpu.memory_space<vmem>>, vector<8x64xf32>
    tpu.vector_store %arg5[%c0_25, %c0_26], %47 {strides = array<i32>} : memref<8x64xf32, #tpu.memory_space<vmem>>, vector<8x64xf32>,
    return
  }
}

</mosaic_0001>

<llo_original>
// kernel: monet_forward.1
$region0: #{monet_forward.1}
  #allocation0 [shape = 'u32[]', space=smem, size = 0x4, offset = 0x4, fixed_abs, tag = 'smem constant byte address 0x4 - core index']
  #allocation1 [shape = 'u32[144,128]{1,0:T(1,128)}', space=vmem, size = 0x12000, scoped, tag = 'internal scratch']
  #allocation2 [shape = 'f32[16,128]{1,0:T(8,128)}', space=vmem, size = 0x2000, scoped, tag = 'scratch operand']
  %s0 = inlined_call_operand.hbm [shape: f32[16,16], index: 0, kind: input, shape index: {}]
  %s1 = inlined_call_operand.hbm [shape: f32[8,128], index: 1, kind: input, shape index: {}]
  %s2 = inlined_call_operand.hbm [shape: f32[8,128], index: 2, kind: input, shape index: {}]
  %s3 = inlined_call_operand.hbm [shape: f32[128,128], index: 3, kind: input, shape index: {}]
  %s4 = inlined_call_operand.hbm [shape: f32[8,64], index: 4, kind: output, shape index: {0}]
  %s5 = inlined_call_operand.hbm [shape: f32[8,64], index: 5, kind: output, shape index: {1}]
  %6 = xla_tuple %s4, %s5
  %s7 = sld [smem:[#allocation0]]
  $region50: #{monet_forward.1} parent=0
    _
  %s9 = ssub.s32 1, %s7
  %s10 = scalar_select 0, %s9, %s7
  $region1: #{monet_forward.1} parent=0
    #allocation3 [shape = 'u8[8192]{0}', space=vmem, size = 0x2000, scoped, tag = 'input window, operand 0, single buffered']
    #allocation4 [shape = 's32[1]{0}', space=sflag, size = 0x4, scoped, tag = 'scoped memory for monet_forward.1']
    #allocation5 [shape = 's32[1]{0}', space=sflag, size = 0x4, scoped, tag = 'scoped memory for monet_forward.1']
    #allocation6 [shape = 'u8[4096]{0}', space=vmem, size = 0x1000, scoped, tag = 'input window, operand 1, single buffered']
    #allocation7 [shape = 's32[1]{0}', space=sflag, size = 0x4, scoped, tag = 'scoped memory for monet_forward.1']
    #allocation8 [shape = 'u8[4096]{0}', space=vmem, size = 0x1000, scoped, tag = 'input window, operand 2, single buffered']
    #allocation9 [shape = 'u8[65536]{0}', space=vmem, size = 0x10000, scoped, tag = 'input window, operand 3, single buffered']
    #allocation10 [shape = 's32[1]{0}', space=sflag, size = 0x4, scoped, tag = 'scoped memory for monet_forward.1']
    #allocation11 [shape = 'u8[4096]{0}', space=vmem, size = 0x1000, scoped, tag = 'output window, operand 0, single buffered']
    #allocation12 [shape = 'u8[4096]{0}', space=vmem, size = 0x1000, scoped, tag = 'output window, operand 1, single buffered']
    #allocation13 [shape = 's32[1]{0}', space=sflag, size = 0x4, scoped, tag = 'scoped memory for monet_forward.1']
    %11 = vsyncpa [#allocation4], 0
    %12 = vsyncpa [#allocation7], 0
    %13 = vsyncpa [#allocation10], 0
    %14 = vsyncpa [#allocation5], 0
    %15 = vsyncpa [#allocation13], 0
    // Predicated region
    $region2: #{monet_forward.1} parent=1 // pred_check
      _
    $region3: #{monet_forward.1} parent=1 // pred_check_branch
      %17 = sbr.rel (0) target = $region5
    $region4: #{monet_forward.1} parent=1 // pred_region
      %s19 = ssub.s32 256, 256
      %20 = vsyncadd [#allocation4], %s19
      %s21 = sshll.u32 [#allocation3], 4
      %s22 = int_to_ptr.vmem [resolvable:$true] %s21
      %27 = dma.hbm_to_vmem [thread:$0]  %s0, 256, %s22, [#allocation4], 128, 128, 8
    $region5: #{monet_forward.1} parent=1 // pred_fallthru
      _
    // Predicated region
    $region6: #{monet_forward.1} parent=1 // pred_check
      _
    $region7: #{monet_forward.1} parent=1 // pred_check_branch
      %29 = sbr.rel (0) target = $region9
    $region8: #{monet_forward.1} parent=1 // pred_region
      %s31 = ssub.s32 128, 128
      %32 = vsyncadd [#allocation7], %s31
      %s34 = sshll.u32 [#allocation6], 4
      %s35 = int_to_ptr.vmem [resolvable:$true] %s34
      %37 = dma.hbm_to_vmem [thread:$0]  %s1, 128, %s35, [#allocation7]
    $region9: #{monet_forward.1} parent=1 // pred_fallthru
      _
    // Predicated region
    $region10: #{monet_forward.1} parent=1 // pred_check
      _
    $region11: #{monet_forward.1} parent=1 // pred_check_branch
      %39 = sbr.rel (0) target = $region13
    $region12: #{monet_forward.1} parent=1 // pred_region
      %s41 = ssub.s32 128, 128
      %42 = vsyncadd [#allocation7], %s41
      %s44 = sshll.u32 [#allocation8], 4
      %s45 = int_to_ptr.vmem [resolvable:$true] %s44
      %47 = dma.hbm_to_vmem [thread:$0]  %s2, 128, %s45, [#allocation7]
    $region13: #{monet_forward.1} parent=1 // pred_fallthru
      _
    // Predicated region
    $region14: #{monet_forward.1} parent=1 // pred_check
      _
    $region15: #{monet_forward.1} parent=1 // pred_check_branch
      %49 = sbr.rel (0) target = $region17
    $region16: #{monet_forward.1} parent=1 // pred_region
      %s51 = ssub.s32 2048, 2048
      %52 = vsyncadd [#allocation10], %s51
      %s53 = sshll.u32 [#allocation9], 4
      %s54 = int_to_ptr.vmem [resolvable:$true] %s53
      %59 = dma.hbm_to_vmem [thread:$0]  %s3, 2048, %s54, [#allocation10], 128, 128, 8
    $region17: #{monet_forward.1} parent=1 // pred_fallthru
      _
    // Predicated region
    $region18: #{monet_forward.1} parent=1 // pred_check
      _
    $region19: #{monet_forward.1} parent=1 // pred_check_branch
      %61 = sbr.rel (0) target = $region21
    $region20: #{monet_forward.1} parent=1 // pred_region
      %62 = dma.done [#allocation4], 256
    $region21: #{monet_forward.1} parent=1 // pred_fallthru
      _
    // Predicated region
    $region22: #{monet_forward.1} parent=1 // pred_check
      _
    $region23: #{monet_forward.1} parent=1 // pred_check_branch
      %64 = sbr.rel (0) target = $region25
    $region24: #{monet_forward.1} parent=1 // pred_region
      %65 = dma.done [#allocation7], 128
    $region25: #{monet_forward.1} parent=1 // pred_fallthru
      _
    // Predicated region
    $region26: #{monet_forward.1} parent=1 // pred_check
      _
    $region27: #{monet_forward.1} parent=1 // pred_check_branch
      %67 = sbr.rel (0) target = $region29
    $region28: #{monet_forward.1} parent=1 // pred_region
      %68 = dma.done [#allocation7], 128
    $region29: #{monet_forward.1} parent=1 // pred_fallthru
      _
    // Predicated region
    $region30: #{monet_forward.1} parent=1 // pred_check
      _
    $region31: #{monet_forward.1} parent=1 // pred_check_branch
      %70 = sbr.rel (0) target = $region33
    $region32: #{monet_forward.1} parent=1 // pred_region
      %71 = dma.done [#allocation10], 2048
    $region33: #{monet_forward.1} parent=1 // pred_fallthru
      _
    %v72 = vld [vmem:[#allocation8] sm:$0xff]
    %v73 = vld [vmem:[#allocation9] sm:$0xff]
    %v74 = vld [vmem:[#allocation9 + $0x8] sm:$0xff]
    %v75 = vld [vmem:[#allocation9 + $0x10] sm:$0xff]
    %v76 = vld [vmem:[#allocation9 + $0x18] sm:$0xff]
    %v77 = vld [vmem:[#allocation9 + $0x20] sm:$0xff]
    %v78 = vld [vmem:[#allocation9 + $0x28] sm:$0xff]
    %v79 = vld [vmem:[#allocation9 + $0x30] sm:$0xff]
    %v80 = vld [vmem:[#allocation9 + $0x38] sm:$0xff]
    %v81 = vld [vmem:[#allocation9 + $0x40] sm:$0xff]
    %v82 = vld [vmem:[#allocation9 + $0x48] sm:$0xff]
    %v83 = vld [vmem:[#allocation9 + $0x50] sm:$0xff]
    %v84 = vld [vmem:[#allocation9 + $0x58] sm:$0xff]
    %v85 = vld [vmem:[#allocation9 + $0x60] sm:$0xff]
    %v86 = vld [vmem:[#allocation9 + $0x68] sm:$0xff]
    %v87 = vld [vmem:[#allocation9 + $0x70] sm:$0xff]
    %v88 = vld [vmem:[#allocation9 + $0x78] sm:$0xff]
    %89 = vmatprep.subr.mxu0 0.0
    %90 = vmatpush1.msra.mxu0 %v88
    %91 = vmatprep.subr.mxu0 0.0
    %92 = vmatpush1.msra.mxu0 %v87
    %93 = vmatprep.subr.mxu0 0.0
    %94 = vmatpush1.msra.mxu0 %v86
    %95 = vmatprep.subr.mxu0 0.0
    %96 = vmatpush1.msra.mxu0 %v85
    %97 = vmatprep.subr.mxu0 0.0
    %98 = vmatpush1.msra.mxu0 %v84
    %99 = vmatprep.subr.mxu0 0.0
    %100 = vmatpush1.msra.mxu0 %v83
    %101 = vmatprep.subr.mxu0 0.0
    %102 = vmatpush1.msra.mxu0 %v82
    %103 = vmatprep.subr.mxu0 0.0
    %104 = vmatpush1.msra.mxu0 %v81
    %105 = vmatprep.subr.mxu0 0.0
    %106 = vmatpush1.msra.mxu0 %v80
    %107 = vmatprep.subr.mxu0 0.0
    %108 = vmatpush1.msra.mxu0 %v79
    %109 = vmatprep.subr.mxu0 0.0
    %110 = vmatpush1.msra.mxu0 %v78
    %111 = vmatprep.subr.mxu0 0.0
    %112 = vmatpush1.msra.mxu0 %v77
    %113 = vmatprep.subr.mxu0 0.0
    %114 = vmatpush1.msra.mxu0 %v76
    %115 = vmatprep.subr.mxu0 0.0
    %116 = vmatpush1.msra.mxu0 %v75
    %117 = vmatprep.subr.mxu0 0.0
    %118 = vmatpush1.msra.mxu0 %v74
    %119 = vmatprep.subr.mxu0 0.0
    %120 = vmatpush1.msra.mxu0 %v73
    %121 = vmatprep.subr.mxu0 0.0
    %122 = vmatpush2.msra.mxu0 0.0
    %123 = vmatprep.subr.mxu0 0.0
    %124 = vmatpush2.msra.mxu0 0.0
    %125 = vmatprep.subr.mxu0 0.0
    %126 = vmatpush2.msra.mxu0 0.0
    %127 = vmatprep.subr.mxu0 0.0
    %128 = vmatpush2.msra.mxu0 0.0
    %129 = vmatprep.subr.mxu0 0.0
    %130 = vmatpush2.msra.mxu0 0.0
    %131 = vmatprep.subr.mxu0 0.0
    %132 = vmatpush2.msra.mxu0 0.0
    %133 = vmatprep.subr.mxu0 0.0
    %134 = vmatpush2.msra.mxu0 0.0
    %135 = vmatprep.subr.mxu0 0.0
    %136 = vmatpush2.msra.mxu0 0.0
    %137 = vmatprep.subr.mxu0 0.0
    %138 = vmatpush2.msra.mxu0 0.0
    %139 = vmatprep.subr.mxu0 0.0
    %140 = vmatpush2.msra.mxu0 0.0
    %141 = vmatprep.subr.mxu0 0.0
    %142 = vmatpush2.msra.mxu0 0.0
    %143 = vmatprep.subr.mxu0 0.0
    %144 = vmatpush2.msra.mxu0 0.0
    %145 = vmatprep.subr.mxu0 0.0
    %146 = vmatpush2.msra.mxu0 0.0
    %147 = vmatprep.subr.mxu0 0.0
    %148 = vmatpush2.msra.mxu0 0.0
    %149 = vmatprep.subr.mxu0 0.0
    %150 = vmatpush2.msra.mxu0 0.0
    %151 = vmatprep.subr.mxu0 0.0
    %152 = vmatpush2.msra.mxu0 0.0
    %153 = vmatprep.mubr.f32.mxu0 0.0
    %154 = vmatmul.mubr.f32.gmra.mxu0 %v72
    %v155 = vpop.f32.mrf.mxu0
    %v156 = vadd.f32 0.0, %v155
    %v157 = vpop.f32.mrf.mxu0
    %158 = vdwg.mxu0
    %v159 = vlaneseq
    %v160 = vand.u32 %v159, 127
    %vm161 = vcmp.lt.s32.totalorder %v160, 32
    %vm162 = vcmp.ge.s32.totalorder %v160, 32
    %vm163 = vcmp.lt.s32.totalorder %v160, 64
    %vm164 = vmand %vm162, %vm163
    %v165 = vmul.f32 %v156, %v156
    %v166 = vsel %vm161, %v165, 0.0
    %167 = vadd.xlane.f32.xlu0 %v166
    %v168 = vpop.xlane.xlu0 %167
    %v169 = vsel %vm164, %v165, 0.0
    %170 = vadd.xlane.f32.xlu0 %v169
    %v171 = vpop.xlane.xlu0 %170
    %v172 = vmax.f32 %v168, 1e-24
    %v173 = vrsqrt.pop %v172
    %v174 = vmax.f32 %v171, 1e-24
    %v175 = vrsqrt.pop %v174
    %v176 = vsel %vm161, %v173, %v175
    %v177 = vmul.f32 %v156, %v176
    %v178 = vld [vmem:[#allocation6] sm:$0xff]
    %179 = vst [vmem:[#allocation2] sm:$0xff] %v178
    %180 = vst [vmem:[#allocation2 + $0x8] sm:$0xff] %v177
    %v181 = vld [vmem:[#allocation2] sm:$0xff]
    %v182 = vld [vmem:[#allocation2 + $0x8] sm:$0xff]
    %v183 = vld [vmem:[#allocation3] sm:$0xff]
    %v184 = vld [vmem:[#allocation3 + $0x8] sm:$0xff]
    %v185 = vmul.f32 %v181, 0.2
    %v186 = vmul.f32 %v182, 0.2
    %vm187 = vcmask 130048
    %v189 = vsel %vm187, %v183, 0
    %v192 = vsel %vm187, %v184, 0
    %194 = vmatprep.subr.mxu0 0.0
    %195 = vmatpush1.msra.mxu0 0.0
    %196 = vmatprep.subr.mxu0 0.0
    %197 = vmatpush1.msra.mxu0 0.0
    %198 = vmatprep.subr.mxu0 0.0
    %199 = vmatpush1.msra.mxu0 0.0
    %200 = vmatprep.subr.mxu0 0.0
    %201 = vmatpush1.msra.mxu0 0.0
    %202 = vmatprep.subr.mxu0 0.0
    %203 = vmatpush1.msra.mxu0 0.0
    %204 = vmatprep.subr.mxu0 0.0
    %205 = vmatpush1.msra.mxu0 0.0
    %206 = vmatprep.subr.mxu0 0.0
    %207 = vmatpush1.msra.mxu0 0.0
    %208 = vmatprep.subr.mxu0 0.0
    %209 = vmatpush1.msra.mxu0 0.0
    %210 = vmatprep.subr.mxu0 0.0
    %211 = vmatpush1.msra.mxu0 0.0
    %212 = vmatprep.subr.mxu0 0.0
    %213 = vmatpush1.msra.mxu0 0.0
    %214 = vmatprep.subr.mxu0 0.0
    %215 = vmatpush1.msra.mxu0 0.0
    %216 = vmatprep.subr.mxu0 0.0
    %217 = vmatpush1.msra.mxu0 0.0
    %218 = vmatprep.subr.mxu0 0.0
    %219 = vmatpush1.msra.mxu0 0.0
    %220 = vmatprep.subr.mxu0 0.0
    %221 = vmatpush1.msra.mxu0 0.0
    %222 = vmatprep.subr.mxu0 0.0
    %223 = vmatpush1.msra.mxu0 %v182
    %224 = vmatprep.subr.mxu0 0.0
    %225 = vmatpush1.msra.mxu0 %v181
    %226 = vmatprep.subr.mxu0 0.0
    %227 = vmatpush2.msra.mxu0 0.0
    %228 = vmatprep.subr.mxu0 0.0
    %229 = vmatpush2.msra.mxu0 0.0
    %230 = vmatprep.subr.mxu0 0.0
    %231 = vmatpush2.msra.mxu0 0.0
    %232 = vmatprep.subr.mxu0 0.0
    %233 = vmatpush2.msra.mxu0 0.0
    %234 = vmatprep.subr.mxu0 0.0
    %235 = vmatpush2.msra.mxu0 0.0
    %236 = vmatprep.subr.mxu0 0.0
    %237 = vmatpush2.msra.mxu0 0.0
    %238 = vmatprep.subr.mxu0 0.0
    %239 = vmatpush2.msra.mxu0 0.0
    %240 = vmatprep.subr.mxu0 0.0
    %241 = vmatpush2.msra.mxu0 0.0
    %242 = vmatprep.subr.mxu0 0.0
    %243 = vmatpush2.msra.mxu0 0.0
    %244 = vmatprep.subr.mxu0 0.0
    %245 = vmatpush2.msra.mxu0 0.0
    %246 = vmatprep.subr.mxu0 0.0
    %247 = vmatpush2.msra.mxu0 0.0
    %248 = vmatprep.subr.mxu0 0.0
    %249 = vmatpush2.msra.mxu0 0.0
    %250 = vmatprep.subr.mxu0 0.0
    %251 = vmatpush2.msra.mxu0 0.0
    %252 = vmatprep.subr.mxu0 0.0
    %253 = vmatpush2.msra.mxu0 0.0
    %254 = vmatprep.subr.mxu0 0.0
    %255 = vmatpush2.msra.mxu0 0.0
    %256 = vmatprep.subr.mxu0 0.0
    %257 = vmatpush2.msra.mxu0 0.0
    %258 = vmatprep.mubr.f32.mxu0 0.0
    %259 = vmatmul.mubr.f32.gmra.mxu0 %v189
    %v260 = vpop.f32.mrf.mxu0
    %v261 = vadd.f32 %v185, %v260
    %v262 = vpop.f32.mrf.mxu0
    %263 = vmatprep.mubr.f32.mxu0 0.0
    %264 = vmatmul.mubr.f32.gmra.mxu0 %v192
    %v265 = vpop.f32.mrf.mxu0
    %v266 = vadd.f32 %v186, %v265
    %v267 = vpop.f32.mrf.mxu0
    %268 = vdwg.mxu0
    %v269 = vmul.f32 %v261, 0.2
    %v270 = vmul.f32 %v266, 0.2
    %271 = vmatprep.subr.mxu0 0.0
    %272 = vmatpush1.msra.mxu0 0.0
    %273 = vmatprep.subr.mxu0 0.0
    %274 = vmatpush1.msra.mxu0 0.0
    %275 = vmatprep.subr.mxu0 0.0
    %276 = vmatpush1.msra.mxu0 0.0
    %277 = vmatprep.subr.mxu0 0.0
    %278 = vmatpush1.msra.mxu0 0.0
    %279 = vmatprep.subr.mxu0 0.0
    %280 = vmatpush1.msra.mxu0 0.0
    %281 = vmatprep.subr.mxu0 0.0
    %282 = vmatpush1.msra.mxu0 0.0
    %283 = vmatprep.subr.mxu0 0.0
    %284 = vmatpush1.msra.mxu0 0.0
    %285 = vmatprep.subr.mxu0 0.0
    %286 = vmatpush1.msra.mxu0 0.0
    %287 = vmatprep.subr.mxu0 0.0
    %288 = vmatpush1.msra.mxu0 0.0
    %289 = vmatprep.subr.mxu0 0.0
    %290 = vmatpush1.msra.mxu0 0.0
    %291 = vmatprep.subr.mxu0 0.0
    %292 = vmatpush1.msra.mxu0 0.0
    %293 = vmatprep.subr.mxu0 0.0
    %294 = vmatpush1.msra.mxu0 0.0
    %295 = vmatprep.subr.mxu0 0.0
    %296 = vmatpush1.msra.mxu0 0.0
    %297 = vmatprep.subr.mxu0 0.0
    %298 = vmatpush1.msra.mxu0 0.0
    %299 = vmatprep.subr.mxu0 0.0
    %300 = vmatpush1.msra.mxu0 %v266
    %301 = vmatprep.subr.mxu0 0.0
    %302 = vmatpush1.msra.mxu0 %v261
    %303 = vmatprep.subr.mxu0 0.0
    %304 = vmatpush2.msra.mxu0 0.0
    %305 = vmatprep.subr.mxu0 0.0
    %306 = vmatpush2.msra.mxu0 0.0
    %307 = vmatprep.subr.mxu0 0.0
    %308 = vmatpush2.msra.mxu0 0.0
    %309 = vmatprep.subr.mxu0 0.0
    %310 = vmatpush2.msra.mxu0 0.0
    %311 = vmatprep.subr.mxu0 0.0
    %312 = vmatpush2.msra.mxu0 0.0
    %313 = vmatprep.subr.mxu0 0.0
    %314 = vmatpush2.msra.mxu0 0.0
    %315 = vmatprep.subr.mxu0 0.0
    %316 = vmatpush2.msra.mxu0 0.0
    %317 = vmatprep.subr.mxu0 0.0
    %318 = vmatpush2.msra.mxu0 0.0
    %319 = vmatprep.subr.mxu0 0.0
    %320 = vmatpush2.msra.mxu0 0.0
    %321 = vmatprep.subr.mxu0 0.0
    %322 = vmatpush2.msra.mxu0 0.0
    %323 = vmatprep.subr.mxu0 0.0
    %324 = vmatpush2.msra.mxu0 0.0
    %325 = vmatprep.subr.mxu0 0.0
    %326 = vmatpush2.msra.mxu0 0.0
    %327 = vmatprep.subr.mxu0 0.0
    %328 = vmatpush2.msra.mxu0 0.0
    %329 = vmatprep.subr.mxu0 0.0
    %330 = vmatpush2.msra.mxu0 0.0
    %331 = vmatprep.subr.mxu0 0.0
    %332 = vmatpush2.msra.mxu0 0.0
    %333 = vmatprep.subr.mxu0 0.0
    %334 = vmatpush2.msra.mxu0 0.0
    %335 = vmatprep.mubr.f32.mxu0 0.0
    %336 = vmatmul.mubr.f32.gmra.mxu0 %v189
    %v337 = vpop.f32.mrf.mxu0
    %v338 = vadd.f32 %v269, %v337
    %v339 = vpop.f32.mrf.mxu0
    %340 = vmatprep.mubr.f32.mxu0 0.0
    %341 = vmatmul.mubr.f32.gmra.mxu0 %v192
    %v342 = vpop.f32.mrf.mxu0
    %v343 = vadd.f32 %v270, %v342
    %v344 = vpop.f32.mrf.mxu0
    %345 = vdwg.mxu0
    %vm346 = vcmask 523264
    %347 = vst.msk [vmem:[#allocation11] sm:$0xff] %vm346, %v338
    %348 = vst.msk [vmem:[#allocation12] sm:$0xff] %vm346, %v343
    // Predicated region
    $region34: #{monet_forward.1} parent=1 // pred_check
      _
    $region35: #{monet_forward.1} parent=1 // pred_check_branch
      %350 = sbr.rel (0) target = $region37
    $region36: #{monet_forward.1} parent=1 // pred_region
      %s352 = ssub.s32 128, 128
      %353 = vsyncadd [#allocation5], %s352
      %s355 = sshll.u32 [#allocation11], 4
      %s356 = int_to_ptr.vmem [resolvable:$true] %s355
      %358 = dma.vmem_to_hbm [thread:$0]  %s356, 128, %s4, [#allocation5]
    $region37: #{monet_forward.1} parent=1 // pred_fallthru
      _
    // Predicated region
    $region38: #{monet_forward.1} parent=1 // pred_check
      _
    $region39: #{monet_forward.1} parent=1 // pred_check_branch
      %360 = sbr.rel (0) target = $region41
    $region40: #{monet_forward.1} parent=1 // pred_region
      %s362 = ssub.s32 128, 128
      %363 = vsyncadd [#allocation13], %s362
      %s365 = sshll.u32 [#allocation12], 4
      %s366 = int_to_ptr.vmem [resolvable:$true] %s365
      %368 = dma.vmem_to_hbm [thread:$0]  %s366, 128, %s5, [#allocation13]
    $region41: #{monet_forward.1} parent=1 // pred_fallthru
      _
    // Predicated region
    $region42: #{monet_forward.1} parent=1 // pred_check
      _
    $region43: #{monet_forward.1} parent=1 // pred_check_branch
      %370 = sbr.rel (0) target = $region45
    $region44: #{monet_forward.1} parent=1 // pred_region
      %371 = dma.done [#allocation5], 128
    $region45: #{monet_forward.1} parent=1 // pred_fallthru
      _
    // Predicated region
    $region46: #{monet_forward.1} parent=1 // pred_check
      _
    $region47: #{monet_forward.1} parent=1 // pred_check_branch
      %373 = sbr.rel (0) target = $region49
    $region48: #{monet_forward.1} parent=1 // pred_region
      %374 = dma.done [#allocation13], 128
    $region49: #{monet_forward.1} parent=1 // pred_fallthru
      _
    %375 = vsyncpa [#allocation4], 1
    %376 = vsyncpa [#allocation7], 1
    %377 = vsyncpa [#allocation10], 1
    %378 = vsyncpa [#allocation5], 1
    %379 = vsyncpa [#allocation13], 1

</llo_original>
